<compile_context>
chip_gen: v6e
topology: v6e:2x2x1
jax: 0.10.0
libtpu: 0.0.40
codegen_flags: <defaults>
</compile_context>

<pallas_src>
import functools

import jax
import jax.numpy as jnp
from jax.experimental import pallas as pl
from jax.experimental.pallas import tpu as pltpu


def _round_up(x, m):
    return (x + m - 1) // m * m


# ---------------------------------------------------------------------------
# Pallas kernels
# ---------------------------------------------------------------------------
def _conv_mm_kernel(a_ref, b_ref, bias_ref, o_ref, *, apply_lrelu, neg_slope):
    """(tm, Kp) x (Kp, Np) matmul, f32 accumulation, + bias (+ LeakyReLU)."""
    y = jnp.dot(a_ref[...], b_ref[...], preferred_element_type=jnp.float32)
    y = y + bias_ref[...]
    if apply_lrelu:
        y = jnp.where(y >= 0.0, y, neg_slope * y)
    o_ref[...] = y.astype(o_ref.dtype)


def _conv_mm_stats_kernel(a_ref, b_ref, bias_ref, o_ref, stats_ref, *, m_valid):
    """Same matmul + bias, plus per-channel sum / sum-of-squares sidecar.

    Padded M rows are masked with a cheap (tm, 1) row iota so they do not
    pollute the BatchNorm batch statistics.  No activation here: BN + LeakyReLU
    runs in a second pass (it depends on the full-batch statistics).
    """
    tm = a_ref.shape[0]
    tn = b_ref.shape[1]
    row0 = pl.program_id(0) * tm          # top-level only (interpret-safe)

    y = jnp.dot(a_ref[...], b_ref[...], preferred_element_type=jnp.float32)
    y = y + bias_ref[...]

    row = jax.lax.broadcasted_iota(jnp.int32, (tm, 1), 0) + row0
    ym = jnp.where(row < m_valid, y, 0.0)
    s1 = jnp.sum(ym, axis=0, keepdims=True)           # (1, tn)
    s2 = jnp.sum(ym * ym, axis=0, keepdims=True)       # (1, tn)
    rid = jax.lax.broadcasted_iota(jnp.int32, (8, tn), 0)
    stats_ref[...] = jnp.where(rid == 0, s1, jnp.where(rid == 1, s2, 0.0))

    o_ref[...] = y.astype(o_ref.dtype)


def _affine_lrelu_kernel(y_ref, scale_ref, shift_ref, o_ref, *, neg_slope):
    """Folded BatchNorm affine + LeakyReLU; bf16 IO, f32 math."""
    z = y_ref[...].astype(jnp.float32) * scale_ref[...] + shift_ref[...]
    o_ref[...] = jnp.where(z >= 0.0, z, neg_slope * z).astype(o_ref.dtype)


# ---------------------------------------------------------------------------
# Wrappers
# ---------------------------------------------------------------------------
def conv_matmul_pallas(a, b, bias, *, emit_stats, apply_lrelu=False,
                       neg_slope=0.2, tm_max=256, out_dtype=jnp.bfloat16,
                       vmem_limit_bytes=48 * 1024 * 1024):
    """a: (M, K) bf16, b: (K, N), bias: (N,).

    Returns (out_padded (Mp, Np) bf16, ch_sum, ch_ssq).  ch_sum / ch_ssq are
    per-channel f32 sums of the pre-activation output over the M valid rows
    (only when emit_stats=True, else None).
    """
    M, K = a.shape
    _, N = b.shape
    Kp = _round_up(K, 128)
    Np = _round_up(N, 128)
    # Full-K / full-N weight block stays resident; tile only M.  Try to give
    # the single parallel grid axis >= 2 blocks (v7x has 2 TensorCores) while
    # capping tm so A double-buffers stay small even with Kp up to 8192.
    tm = min(tm_max, max(8, _round_up(pl.cdiv(M, 2), 8)))
    Mp = _round_up(M, tm)
    n_i = Mp // tm

    # bf16 operands, padded once (patches arrive already in bf16).
    a_p = jnp.pad(a.astype(jnp.bfloat16), ((0, Mp - M), (0, Kp - K)))
    b_p = jnp.pad(b.astype(jnp.bfloat16), ((0, Kp - K), (0, Np - N)))
    bias_p = jnp.pad(bias.astype(jnp.float32), (0, Np - N)).reshape(1, Np)

    cost = pl.CostEstimate(
        flops=int(2 * M * K * N),
        transcendentals=0,
        bytes_accessed=int(a_p.size * 2 + b_p.size * 2 + Mp * Np * 2),
    )
    compiler_params = pltpu.CompilerParams(
        dimension_semantics=("parallel",),
        vmem_limit_bytes=vmem_limit_bytes,
    )
    in_specs = [
        pl.BlockSpec((tm, Kp), lambda i: (i, 0)),
        pl.BlockSpec((Kp, Np), lambda i: (0, 0)),   # constant index -> resident
        pl.BlockSpec((1, Np), lambda i: (0, 0)),
    ]

    if emit_stats:
        out, stats = pl.pallas_call(
            functools.partial(_conv_mm_stats_kernel, m_valid=M),
            out_shape=(
                jax.ShapeDtypeStruct((Mp, Np), out_dtype),
                jax.ShapeDtypeStruct((8 * n_i, Np), jnp.float32),
            ),
            grid_spec=pltpu.PrefetchScalarGridSpec(
                num_scalar_prefetch=0,
                grid=(n_i,),
                in_specs=in_specs,
                out_specs=(
                    pl.BlockSpec((tm, Np), lambda i: (i, 0)),
                    pl.BlockSpec((8, Np), lambda i: (i, 0)),
                ),
            ),
            compiler_params=compiler_params,
            cost_estimate=cost,
        )(a_p, b_p, bias_p)
        stats_r = stats.reshape(n_i, 8, Np)
        ch_sum = jnp.sum(stats_r[:, 0, :N], axis=0)
        ch_ssq = jnp.sum(stats_r[:, 1, :N], axis=0)
        return out, ch_sum, ch_ssq

    out = pl.pallas_call(
        functools.partial(_conv_mm_kernel, apply_lrelu=apply_lrelu,
                          neg_slope=neg_slope),
        out_shape=jax.ShapeDtypeStruct((Mp, Np), out_dtype),
        grid_spec=pltpu.PrefetchScalarGridSpec(
            num_scalar_prefetch=0,
            grid=(n_i,),
            in_specs=in_specs,
            out_specs=pl.BlockSpec((tm, Np), lambda i: (i, 0)),
        ),
        compiler_params=compiler_params,
        cost_estimate=cost,
    )(a_p, b_p, bias_p)
    return out, None, None


def affine_lrelu_pallas(y_pad, scale_p, shift_p, *, neg_slope=0.2, tm_max=1024):
    """y_pad: (Mp, Cp) bf16 (Mp % 8 == 0, Cp % 128 == 0); scale/shift: (Cp,)."""
    Mp0, Cp = y_pad.shape
    tm = min(tm_max, Mp0)
    Mp = _round_up(Mp0, tm)
    if Mp != Mp0:
        y_pad = jnp.pad(y_pad, ((0, Mp - Mp0), (0, 0)))
    s = scale_p.astype(jnp.float32).reshape(1, Cp)
    t = shift_p.astype(jnp.float32).reshape(1, Cp)
    return pl.pallas_call(
        functools.partial(_affine_lrelu_kernel, neg_slope=neg_slope),
        out_shape=jax.ShapeDtypeStruct((Mp, Cp), y_pad.dtype),
        grid_spec=pltpu.PrefetchScalarGridSpec(
            num_scalar_prefetch=0,
            grid=(Mp // tm,),
            in_specs=[
                pl.BlockSpec((tm, Cp), lambda i: (i, 0)),
                pl.BlockSpec((1, Cp), lambda i: (0, 0)),
                pl.BlockSpec((1, Cp), lambda i: (0, 0)),
            ],
            out_specs=pl.BlockSpec((tm, Cp), lambda i: (i, 0)),
        ),
        compiler_params=pltpu.CompilerParams(
            dimension_semantics=("parallel",)),
    )(y_pad, s, t)


# ---------------------------------------------------------------------------
# Conv2d (kernel=4, padding=2, stride in {1,2}) via bf16 im2col
# ---------------------------------------------------------------------------
def _im2col(x_nhwc, ksize, stride, pad):
    N, H, W, C = x_nhwc.shape
    Ho = (H + 2 * pad - ksize) // stride + 1
    Wo = (W + 2 * pad - ksize) // stride + 1
    xp = jnp.pad(x_nhwc, ((0, 0), (pad, pad), (pad, pad), (0, 0)))
    cols = []
    for kh in range(ksize):
        for kw in range(ksize):
            cols.append(
                xp[:, kh:kh + (Ho - 1) * stride + 1:stride,
                     kw:kw + (Wo - 1) * stride + 1:stride, :]
            )
    patches = jnp.stack(cols, axis=3)           # (N, Ho, Wo, k*k, C) bf16
    return patches.reshape(N * Ho * Wo, ksize * ksize * C), (N, Ho, Wo)


# ---------------------------------------------------------------------------
# Parameter construction (deterministic, mirrors NLayerDiscriminator.__init__)
# ---------------------------------------------------------------------------
def init_params(key, input_nc, ndf=64, n_layers=3):
    kw = 4
    specs = [(input_nc, ndf, 2, False)]                     # model0: conv + LReLU
    nf = ndf
    for _ in range(1, n_layers):                            # model1..model(n_layers-1)
        nf_prev, nf = nf, min(nf * 2, 512)
        specs.append((nf_prev, nf, 2, True))                # conv + BN + LReLU
    nf_prev, nf = nf, min(nf * 2, 512)
    specs.append((nf_prev, nf, 1, True))                    # model(n_layers): stride 1
    specs.append((nf, 1, 1, False))                         # final: conv only
    params = []
    for cin, cout, stride, has_bn in specs:
        key, k_w, k_b = jax.random.split(key, 3)
        params.append(dict(
            w=jax.random.normal(k_w, (cout, cin, kw, kw), jnp.float32) * 0.02,
            b=jax.random.normal(k_b, (cout,), jnp.float32) * 0.01,
            gamma=jnp.ones((cout,), jnp.float32) if has_bn else None,
            beta=jnp.zeros((cout,), jnp.float32) if has_bn else None,
            stride=stride,
            has_bn=has_bn,
        ))
    return params


# ---------------------------------------------------------------------------
# Forward pass: returns (act[-1], act[:-1]) exactly like the PyTorch module
# ---------------------------------------------------------------------------
def nlayer_discriminator_forward(x_nchw, params):
    # NCHW -> NHWC, bf16 activations between layers (halves HBM traffic).
    cur = jnp.transpose(x_nchw, (0, 2, 3, 1)).astype(jnp.bfloat16)
    acts = []
    n_blocks = len(params)
    for i, p in enumerate(params):
        Cout, Cin, kh, kw_ = p["w"].shape
        patches, (Nb, Ho, Wo) = _im2col(cur, kh, p["stride"], 2)
        M = Nb * Ho * Wo
        # (Cout,Cin,kh,kw) -> (kh,kw,Cin,Cout) -> (kh*kw*Cin, Cout): matches the
        # im2col flattening order; cross-correlation like PyTorch Conv2d.
        w_mat = jnp.transpose(p["w"], (2, 3, 1, 0)).reshape(kh * kw_ * Cin, Cout)
        is_last = i == n_blocks - 1

        if p["has_bn"]:
            y_pad, ch_sum, ch_ssq = conv_matmul_pallas(
                patches, w_mat, p["b"], emit_stats=True)
            # training-mode BatchNorm2d: batch stats over (N,H,W), biased var,
            # eps=1e-5, computed from the kernel's f32 per-channel sums.
            # NOTE: E[x^2]-E[x]^2 can cancel when |mean| >> std; acceptable here.
            mean = ch_sum / M
            var = jnp.maximum(ch_ssq / M - mean * mean, 0.0)
            scale = p["gamma"] * jax.lax.rsqrt(var + 1e-5)
            shift = p["beta"] - mean * scale
            Np_pad = y_pad.shape[1]
            scale_p = jnp.pad(scale, (0, Np_pad - Cout))
            shift_p = jnp.pad(shift, (0, Np_pad - Cout))
            y_pad = affine_lrelu_pallas(y_pad, scale_p, shift_p, neg_slope=0.2)
        else:
            y_pad, _, _ = conv_matmul_pallas(
                patches, w_mat, p["b"], emit_stats=False,
                apply_lrelu=not is_last, neg_slope=0.2)

        cur = y_pad[:M, :Cout].reshape(Nb, Ho, Wo, Cout)
        acts.append(cur)

    # back to NCHW, f32 like the reference module
    acts_nchw = [jnp.transpose(a, (0, 3, 1, 2)).astype(jnp.float32) for a in acts]
    return acts_nchw[-1], acts_nchw[:-1]


if __name__ == "__main__":
    key = jax.random.PRNGKey(0)
    k_x, k_p = jax.random.split(key)

    input_nc, ndf, n_layers = 4, 8, 3          # small synthetic config
    x = jax.random.normal(k_x, (2, input_nc, 16, 16), jnp.float32)

    params = init_params(k_p, input_nc, ndf=ndf, n_layers=n_layers)
    final, feats = nlayer_discriminator_forward(x, params)

    jax.block_until_ready(final)
    for f in feats:
        jax.block_until_ready(f)

    # sanity: spatial sizes 16 -> 9 -> 5 -> 3 -> 4 -> 5, final (2,1,5,5)
    assert final.shape == (2, 1, 5, 5), final.shape
    assert len(feats) == n_layers + 1
    assert bool(jnp.all(jnp.isfinite(final)))
    print("KERNEL_OK")
</pallas_src>

<mosaic_0001>
module attributes {stable_mosaic.version = 11 : i64} {
  func.func @_conv_mm_kernel(%arg0: i32, %arg1: memref<88x128xbf16, #tpu.memory_space<vmem>>, %arg2: memref<128x128xbf16, #tpu.memory_space<vmem>>, %arg3: memref<1x128xf32, #tpu.memory_space<vmem>>, %arg4: memref<88x128xbf16, #tpu.memory_space<vmem>>) attributes {dimension_semantics = [#tpu.dimension_semantics<parallel>], iteration_bounds = array<i64: 2>, scalar_prefetch = 0 : i64, scratch_operands = 0 : i64, tpu.core_type = #tpu.core_type<tc>, window_params = [{transform_indices = @transform_0, window_bounds = array<i64: 88, 128>}, {pipeline_mode = #tpu.pipeline_mode<synchronous>, transform_indices = @transform_1, window_bounds = array<i64: 128, 128>}, {pipeline_mode = #tpu.pipeline_mode<synchronous>, transform_indices = @transform_2, window_bounds = array<i64: 1, 128>}, {transform_indices = @transform_3, window_bounds = array<i64: 88, 128>}]} {
    %c0 = arith.constant 0 : index
    %c0_0 = arith.constant 0 : index
    %0 = vector.load %arg1[%c0, %c0_0] : memref<88x128xbf16, #tpu.memory_space<vmem>>, vector<88x128xbf16>
    %c0_1 = arith.constant 0 : index
    %c0_2 = arith.constant 0 : index
    %1 = vector.load %arg2[%c0_1, %c0_2] : memref<128x128xbf16, #tpu.memory_space<vmem>>, vector<128x128xbf16>
    %cst = arith.constant dense<0.000000e+00> : vector<88x128xf32>
    %2 = tpu.matmul %0, %1, %cst {dimension_numbers = #tpu.dot_dimension_numbers<[1], [0], [0], [1], [0, 0, 1, 1], [], []>} : vector<88x128xbf16>, vector<128x128xbf16>, vector<88x128xf32> -> vector<88x128xf32>
    %c0_3 = arith.constant 0 : index
    %c0_4 = arith.constant 0 : index
    %3 = vector.load %arg3[%c0_3, %c0_4] : memref<1x128xf32, #tpu.memory_space<vmem>>, vector<1x128xf32>
    %4 = vector.broadcast %3 : vector<1x128xf32> to vector<88x128xf32>
    %5 = arith.addf %2, %4 : vector<88x128xf32>
    %cst_5 = arith.constant 0.000000e+00 : f32
    %6 = vector.broadcast %cst_5 : f32 to vector<88x128xf32>
    %7 = arith.cmpf oge, %5, %6 : vector<88x128xf32>
    %cst_6 = arith.constant 2.000000e-01 : f32
    %8 = vector.broadcast %cst_6 : f32 to vector<88x128xf32>
    %9 = arith.mulf %8, %5 : vector<88x128xf32>
    %10 = arith.select %7, %5, %9 : vector<88x128xi1>, vector<88x128xf32>
    %11 = arith.truncf %10 : vector<88x128xf32> to vector<88x128xbf16>
    %c0_7 = arith.constant 0 : index
    %c0_8 = arith.constant 0 : index
    %12 = vector.load %arg4[%c0_7, %c0_8] : memref<88x128xbf16, #tpu.memory_space<vmem>>, vector<88x128xbf16>
    tpu.vector_store %arg4[%c0_7, %c0_8], %11 {strides = array<i32>} : memref<88x128xbf16, #tpu.memory_space<vmem>>, vector<88x128xbf16>,
    return
  }
  func.func @transform_0(%arg0: i32) -> (i32, i32) {
    %c0_i32 = arith.constant 0 : i32
    %c0_i32_0 = arith.constant 0 : i32
    return %arg0, %c0_i32 : i32, i32
  }
  func.func @transform_1(%arg0: i32) -> (i32, i32) {
    %c0_i32 = arith.constant 0 : i32
    %c0_i32_0 = arith.constant 0 : i32
    %c0_i32_1 = arith.constant 0 : i32
    return %c0_i32, %c0_i32_0 : i32, i32
  }
  func.func @transform_2(%arg0: i32) -> (i32, i32) {
    %c0_i32 = arith.constant 0 : i32
    %c0_i32_0 = arith.constant 0 : i32
    %c0_i32_1 = arith.constant 0 : i32
    return %c0_i32, %c0_i32_0 : i32, i32
  }
  func.func @transform_3(%arg0: i32) -> (i32, i32) {
    %c0_i32 = arith.constant 0 : i32
    %c0_i32_0 = arith.constant 0 : i32
    return %arg0, %c0_i32 : i32, i32
  }
}

</mosaic_0001>

<llo_original>
// kernel: tpu_custom_call.1
$region0: #{tpu_custom_call.1}
  #allocation0 [shape = 'u32[]', space=smem, size = 0x4, offset = 0x4, fixed_abs, tag = 'smem constant byte address 0x4 - core index']
  #allocation1 [shape = 'u32[144,128]{1,0:T(1,128)}', space=vmem, size = 0x12000, scoped, tag = 'internal scratch']
  %s0 = inlined_call_operand.hbm [shape: bf16[176,128], index: 0, kind: input, shape index: {}]
  %s1 = inlined_call_operand.hbm [shape: bf16[128,128], index: 1, kind: input, shape index: {}]
  %s2 = inlined_call_operand.vmem [shape: f32[1,128], index: 2, kind: input, shape index: {}]
  %s3 = inlined_call_operand.hbm [shape: bf16[176,128], index: 3, kind: output, shape index: {}]
  %s4 = sld [smem:[#allocation0]]
  $region53: #{tpu_custom_call.1} parent=0
    _
  %s6 = ssub.s32 1, %s4
  %s7 = scalar_select 0, %s6, %s4
  $region1: #{tpu_custom_call.1} parent=0
    #allocation2 [shape = 'u8[45056]{0}', space=vmem, size = 0xb000, scoped, tag = 'input window, operand 0']
    #allocation3 [shape = 's32[2]{0}', space=sflag, size = 0x8, scoped, tag = 'scoped memory for tpu_custom_call.1']
    #allocation4 [shape = 's32[2]{0}', space=sflag, size = 0x8, scoped, tag = 'scoped memory for tpu_custom_call.1']
    #allocation5 [shape = 'u8[32768]{0}', space=vmem, size = 0x8000, scoped, tag = 'input window, operand 1, single buffered']
    #allocation6 [shape = 's32[1]{0}', space=sflag, size = 0x4, scoped, tag = 'scoped memory for tpu_custom_call.1']
    #allocation7 [shape = 'u8[45056]{0}', space=vmem, size = 0xb000, scoped, tag = 'output window, operand 0']
    %8 = vsyncpa [#allocation3], 0
    %s9 = scalar_lea.sflag [#allocation3], 1
    %10 = vsyncpa %s9, 0
    %11 = vsyncpa [#allocation6], 0
    %12 = vsyncpa [#allocation4], 0
    %s13 = scalar_lea.sflag [#allocation4], 1
    %14 = vsyncpa %s13, 0
    loop: start=0, step=1, limit=4
    $region2: #{tpu_custom_call.1} parent=1 // loop_pre_header
      _
    $region3: #{tpu_custom_call.1} parent=1 // loop_header
      %s16 = sphi 0, %s20
      %p17 = scmp.ge.s32.totalorder %s16, 4
      %s26 = sphi 0, %s28
      %s29 = sphi 0, %s26
      %s30 = sphi 0, %s29
      %s46 = sphi 0, %s30
      %s50 = sphi 0, %s50
      %s52 = sphi 0, %s50
      %s53 = sphi 0, %s52
      %s67 = sphi 0, %s53
      %s71 = sphi 0, %s71
      %s73 = sphi 0, %s71
      %s74 = sphi 0, %s73
      %s88 = sphi 0, %s74
      %s94 = sphi 0, %s96
      %s97 = sphi 0, %s94
      %s98 = sphi 0, %s97
      %s114 = sphi 0, %s98
    $region4: #{tpu_custom_call.1} parent=1 // loop_header_branch
      %19 = sbr.rel (%p17) target = $region8
    $region5: #{tpu_custom_call.1} parent=1 // loop_body
      %s21 = ssub.s32 %s16, 1
      %s22 = ssub.s32 %s16, 2
      %s23 = sadd.s32 %s16, 1
      %s24 = ssub.s32 %s16, %s23
      %p25 = scmp.eq.s32.totalorder %s24, 0
      %s27 = sadd.s32 %s26, 1
      %s28 = scalar_select %p25, %s26, %s27
      %p31 = pneg %p25
      %p32 = scmp.eq.s32.totalorder %s16, 1
      %p33 = por %p31, %p32
      %p34 = scmp.ne.s32.totalorder %s26, %s29
      %p35 = scmp.eq.s32.totalorder %s16, 0
      %p36 = por %p34, %p35
      %p37 = scmp.ne.s32.totalorder %s26, %s29
      %p38 = scmp.eq.s32.totalorder %s21, 1
      %p39 = por %p37, %p38
      %p40 = scmp.ne.s32.totalorder %s29, %s30
      %p41 = scmp.eq.s32.totalorder %s21, 0
      %p42 = por %p40, %p41
      %p43 = scmp.ne.s32.totalorder %s29, %s30
      %p44 = scmp.eq.s32.totalorder %s22, 1
      %p45 = por %p43, %p44
      %p47 = scmp.ne.s32.totalorder %s30, %s46
      %p48 = scmp.eq.s32.totalorder %s22, 0
      %p49 = por %p47, %p48
      %s51 = sadd.s32 %s50, 1
      %p54 = scmp.eq.s32.totalorder %s16, 1
      %p55 = scmp.ne.s32.totalorder %s50, %s52
      %p56 = scmp.eq.s32.totalorder %s16, 0
      %p57 = por %p55, %p56
      %p58 = scmp.ne.s32.totalorder %s50, %s52
      %p59 = scmp.eq.s32.totalorder %s21, 1
      %p60 = por %p58, %p59
      %p61 = scmp.ne.s32.totalorder %s52, %s53
      %p62 = scmp.eq.s32.totalorder %s21, 0
      %p63 = por %p61, %p62
      %p64 = scmp.ne.s32.totalorder %s52, %s53
      %p65 = scmp.eq.s32.totalorder %s22, 1
      %p66 = por %p64, %p65
      %p68 = scmp.ne.s32.totalorder %s53, %s67
      %p69 = scmp.eq.s32.totalorder %s22, 0
      %p70 = por %p68, %p69
      %s72 = sadd.s32 %s71, 1
      %p75 = scmp.eq.s32.totalorder %s16, 1
      %p76 = scmp.ne.s32.totalorder %s71, %s73
      %p77 = scmp.eq.s32.totalorder %s16, 0
      %p78 = por %p76, %p77
      %p79 = scmp.ne.s32.totalorder %s71, %s73
      %p80 = scmp.eq.s32.totalorder %s21, 1
      %p81 = por %p79, %p80
      %p82 = scmp.ne.s32.totalorder %s73, %s74
      %p83 = scmp.eq.s32.totalorder %s21, 0
      %p84 = por %p82, %p83
      %p85 = scmp.ne.s32.totalorder %s73, %s74
      %p86 = scmp.eq.s32.totalorder %s22, 1
      %p87 = por %p85, %p86
      %p89 = scmp.ne.s32.totalorder %s74, %s88
      %p90 = scmp.eq.s32.totalorder %s22, 0
      %p91 = por %p89, %p90
      %s92 = ssub.s32 %s16, %s23
      %p93 = scmp.eq.s32.totalorder %s92, 0
      %s95 = sadd.s32 %s94, 1
      %s96 = scalar_select %p93, %s94, %s95
      %p99 = pneg %p93
      %p100 = scmp.eq.s32.totalorder %s16, 1
      %p101 = por %p99, %p100
      %p102 = scmp.ne.s32.totalorder %s94, %s97
      %p103 = scmp.eq.s32.totalorder %s16, 0
      %p104 = por %p102, %p103
      %p105 = scmp.ne.s32.totalorder %s94, %s97
      %p106 = scmp.eq.s32.totalorder %s21, 1
      %p107 = por %p105, %p106
      %p108 = scmp.ne.s32.totalorder %s97, %s98
      %p109 = scmp.eq.s32.totalorder %s21, 0
      %p110 = por %p108, %p109
      %p111 = scmp.ne.s32.totalorder %s97, %s98
      %p112 = scmp.eq.s32.totalorder %s22, 1
      %p113 = por %p111, %p112
      %p115 = scmp.ne.s32.totalorder %s98, %s114
      %p116 = scmp.eq.s32.totalorder %s22, 0
      %p117 = por %p115, %p116
      %p118 = scmp.le.s32.totalorder 1, %s16
      %p119 = scmp.lt.s32.totalorder %s16, 3
      %p120 = pnand %p118, %p119
      %p121 = pneg %p120
      // Predicated region
      $region9: #{tpu_custom_call.1} parent=5 // pred_check
        _
      $region10: #{tpu_custom_call.1} parent=5 // pred_check_branch
        %123 = sbr.rel (%p120) target = $region12
      $region11: #{tpu_custom_call.1} parent=5 // pred_region
        %s124 = ssub.s32 %s16, 1
        // Predicated region
        $region13: #{tpu_custom_call.1} parent=11 // pred_check
          %p125 = pneg %p63
        $region14: #{tpu_custom_call.1} parent=11 // pred_check_branch
          %127 = sbr.rel (%p125) target = $region16
        $region15: #{tpu_custom_call.1} parent=11 // pred_region
          %s129 = ssub.s32 1024, 1024
          %130 = vsyncadd [#allocation6], %s129
          %s131 = sshll.u32 [#allocation5], 4
          %s132 = int_to_ptr.vmem [resolvable:$true] %s131
          %137 = dma.hbm_to_vmem [thread:$0]  %s1, 1024, %s132, [#allocation6], 64, 64, 4
        $region16: #{tpu_custom_call.1} parent=11 // pred_fallthru
          _
        // Predicated region
        $region17: #{tpu_custom_call.1} parent=11 // pred_check
          %p138 = pneg %p84
        $region18: #{tpu_custom_call.1} parent=11 // pred_check_branch
          %140 = sbr.rel (%p138) target = $region20
        $region19: #{tpu_custom_call.1} parent=11 // pred_region
          _
        $region20: #{tpu_custom_call.1} parent=11 // pred_fallthru
          _
      $region12: #{tpu_custom_call.1} parent=5 // pred_fallthru
        _
      %p141 = scmp.lt.s32.totalorder %s16, 2
      // Predicated region
      $region21: #{tpu_custom_call.1} parent=5 // pred_check
        %p142 = pneg %p141
      $region22: #{tpu_custom_call.1} parent=5 // pred_check_branch
        %144 = sbr.rel (%p142) target = $region24
      $region23: #{tpu_custom_call.1} parent=5 // pred_region
        // Predicated region
        $region25: #{tpu_custom_call.1} parent=23 // pred_check
          %p145 = pneg %p36
        $region26: #{tpu_custom_call.1} parent=23 // pred_check_branch
          %147 = sbr.rel (%p145) target = $region28
        $region27: #{tpu_custom_call.1} parent=23 // pred_region
          %s148 = sand.u32 %s26, 1
          %s149 = scalar_lea.sflag [#allocation3], %s148
          %s150 = sand.u32 %s26, 1
          %s151 = smul.addr %s150, 44
          %s152 = scalar_lea.vmem [#allocation2], %s151
          %s153 = smul.u32 11, %s16
          %s155 = ssub.s32 704, 704
          %156 = vsyncadd %s149, %s155
          %s157 = smul.addr %s153, 64
          %s158 = scalar_lea.hbm %s0, %s157
          %s159 = sshll.u32 %s152, 4
          %s160 = int_to_ptr.vmem [resolvable:$true] %s159
          %165 = dma.hbm_to_vmem [thread:$0]  %s158, 704, %s160, %s149, 64, 64, 4
        $region28: #{tpu_custom_call.1} parent=23 // pred_fallthru
          _
      $region24: #{tpu_custom_call.1} parent=5 // pred_fallthru
        _
      %p166 = scmp.le.s32.totalorder 1, %s16
      %p167 = scmp.lt.s32.totalorder %s16, 3
      %p168 = pnand %p166, %p167
      %p169 = pneg %p168
      // Predicated region
      $region29: #{tpu_custom_call.1} parent=5 // pred_check
        _
      $region30: #{tpu_custom_call.1} parent=5 // pred_check_branch
        %171 = sbr.rel (%p168) target = $region32
      $region31: #{tpu_custom_call.1} parent=5 // pred_region
        %s172 = ssub.s32 %s16, 1
        %s173 = sand.u32 %s29, 1
        %s174 = scalar_lea.sflag [#allocation3], %s173
        %s175 = sand.u32 %s29, 1
        %s176 = smul.addr %s175, 44
        %s177 = scalar_lea.vmem [#allocation2], %s176
        // Predicated region
        $region33: #{tpu_custom_call.1} parent=31 // pred_check
          %p178 = pneg %p42
        $region34: #{tpu_custom_call.1} parent=31 // pred_check_branch
          %180 = sbr.rel (%p178) target = $region36
        $region35: #{tpu_custom_call.1} parent=31 // pred_region
          %181 = dma.done %s174, 704
        $region36: #{tpu_custom_call.1} parent=31 // pred_fallthru
          _
        // Predicated region
        $region37: #{tpu_custom_call.1} parent=31 // pred_check
          %p182 = pneg %p63
        $region38: #{tpu_custom_call.1} parent=31 // pred_check_branch
          %184 = sbr.rel (%p182) target = $region40
        $region39: #{tpu_custom_call.1} parent=31 // pred_region
          %185 = dma.done [#allocation6], 1024
        $region40: #{tpu_custom_call.1} parent=31 // pred_fallthru
          _
        %s186 = sand.u32 %s29, 1
        %s187 = scalar_lea.sflag [#allocation3], %s186
        %s188 = sand.u32 %s29, 1
        %s189 = smul.addr %s188, 44
        %s190 = scalar_lea.vmem [#allocation2], %s189
        %p191 = pneg %p42
        %p192 = pneg %p39
        %p193 = pneg %p63
        %p194 = pneg %p60
        %p195 = pneg %p84
        %p196 = pneg %p81
        %p197 = pneg %p110
        %p198 = pneg %p107
        %s199 = sand.u32 %s97, 1
        %s200 = scalar_lea.sflag [#allocation4], %s199
        %s201 = sand.u32 %s97, 1
        %s202 = smul.addr %s201, 44
        %s203 = scalar_lea.vmem [#allocation7], %s202
        %s204 = smul.u32 11, %s21
        %s205 = smul.u32 11, %s21
        %v207 = vld [vmem:[%s177] sm:$0xf]
        %v208 = vld [vmem:[%s177 + $0x4] sm:$0xf]
        %v209 = vld [vmem:[%s177 + $0x8] sm:$0xf]
        %v210 = vld [vmem:[%s177 + $0xc] sm:$0xf]
        %v211 = vld [vmem:[%s177 + $0x10] sm:$0xf]
        %v212 = vld [vmem:[%s177 + $0x14] sm:$0xf]
        %v213 = vld [vmem:[%s177 + $0x18] sm:$0xf]
        %v214 = vld [vmem:[%s177 + $0x1c] sm:$0xf]
        %v215 = vld [vmem:[%s177 + $0x20] sm:$0xf]
        %v216 = vld [vmem:[%s177 + $0x24] sm:$0xf]
        %v217 = vld [vmem:[%s177 + $0x28] sm:$0xf]
        %v218 = vld [vmem:[#allocation5] sm:$0xf]
        %v219 = vld [vmem:[#allocation5 + $0x4] sm:$0xf]
        %v220 = vld [vmem:[#allocation5 + $0x8] sm:$0xf]
        %v221 = vld [vmem:[#allocation5 + $0xc] sm:$0xf]
        %v222 = vld [vmem:[#allocation5 + $0x10] sm:$0xf]
        %v223 = vld [vmem:[#allocation5 + $0x14] sm:$0xf]
        %v224 = vld [vmem:[#allocation5 + $0x18] sm:$0xf]
        %v225 = vld [vmem:[#allocation5 + $0x1c] sm:$0xf]
        %v226 = vld [vmem:[#allocation5 + $0x20] sm:$0xf]
        %v227 = vld [vmem:[#allocation5 + $0x24] sm:$0xf]
        %v228 = vld [vmem:[#allocation5 + $0x28] sm:$0xf]
        %v229 = vld [vmem:[#allocation5 + $0x2c] sm:$0xf]
        %v230 = vld [vmem:[#allocation5 + $0x30] sm:$0xf]
        %v231 = vld [vmem:[#allocation5 + $0x34] sm:$0xf]
        %v232 = vld [vmem:[#allocation5 + $0x38] sm:$0xf]
        %v233 = vld [vmem:[#allocation5 + $0x3c] sm:$0xf]
        %v234 = vld [vmem:[%s2] sm:$0x1]
        %v236 = vlaneseq
        %v237 = vshrl.u32 %v236, 7
        %v238 = vsub.s32 0, %v237
        %v239 = vrot.slane %v234, %v238
        %v252 = vunpack.c.l.b16 %v207
        %v253 = vunpack.c.l.b16 %v208
        %v254 = vunpack.c.l.b16 %v209
        %v255 = vunpack.c.l.b16 %v210
        %v256 = vunpack.c.l.b16 %v211
        %v257 = vunpack.c.l.b16 %v212
        %v258 = vunpack.c.l.b16 %v213
        %v259 = vunpack.c.l.b16 %v214
        %v260 = vunpack.c.l.b16 %v215
        %v261 = vunpack.c.l.b16 %v216
        %v262 = vunpack.c.l.b16 %v217
        %v263 = vpack.c.b16 %v253, %v252
        %v264 = vpack.c.b16 %v255, %v254
        %v265 = vpack.c.b16 %v257, %v256
        %v266 = vpack.c.b16 %v259, %v258
        %v267 = vpack.c.b16 %v261, %v260
        %v268 = vpack.c.b16 %v262, %v262
        %v291 = vunpack.c.l.b16 %v218
        %v292 = vunpack.c.l.b16 %v219
        %v293 = vunpack.c.l.b16 %v220
        %v294 = vunpack.c.l.b16 %v221
        %v295 = vunpack.c.l.b16 %v222
        %v296 = vunpack.c.l.b16 %v223
        %v297 = vunpack.c.l.b16 %v224
        %v298 = vunpack.c.l.b16 %v225
        %v299 = vunpack.c.l.b16 %v226
        %v300 = vunpack.c.l.b16 %v227
        %v301 = vunpack.c.l.b16 %v228
        %v302 = vunpack.c.l.b16 %v229
        %v303 = vunpack.c.l.b16 %v230
        %v304 = vunpack.c.l.b16 %v231
        %v305 = vunpack.c.l.b16 %v232
        %v306 = vunpack.c.l.b16 %v233
        %v307 = vpack.c.b16 %v292, %v291
        %v308 = vpack.c.b16 %v294, %v293
        %v309 = vpack.c.b16 %v296, %v295
        %v310 = vpack.c.b16 %v298, %v297
        %v311 = vpack.c.b16 %v300, %v299
        %v312 = vpack.c.b16 %v302, %v301
        %v313 = vpack.c.b16 %v304, %v303
        %v314 = vpack.c.b16 %v306, %v305
        %323 = vmatprep.subr.bf16.mxu0 0
        %324 = vmatpush1.bf16.msra.mxu0 %v314
        %325 = vmatprep.subr.bf16.mxu0 0
        %326 = vmatpush1.bf16.msra.mxu0 %v313
        %327 = vmatprep.subr.bf16.mxu0 0
        %328 = vmatpush1.bf16.msra.mxu0 %v312
        %329 = vmatprep.subr.bf16.mxu0 0
        %330 = vmatpush1.bf16.msra.mxu0 %v311
        %331 = vmatprep.subr.bf16.mxu0 0
        %332 = vmatpush1.bf16.msra.mxu0 %v310
        %333 = vmatprep.subr.bf16.mxu0 0
        %334 = vmatpush1.bf16.msra.mxu0 %v309
        %335 = vmatprep.subr.bf16.mxu0 0
        %336 = vmatpush1.bf16.msra.mxu0 %v308
        %337 = vmatprep.subr.bf16.mxu0 0
        %338 = vmatpush1.bf16.msra.mxu0 %v307
        %339 = vmatprep.subr.bf16.mxu0 0
        %340 = vmatpush2.bf16.msra.mxu0 0
        %341 = vmatprep.subr.bf16.mxu0 0
        %342 = vmatpush2.bf16.msra.mxu0 0
        %343 = vmatprep.subr.bf16.mxu0 0
        %344 = vmatpush2.bf16.msra.mxu0 0
        %345 = vmatprep.subr.bf16.mxu0 0
        %346 = vmatpush2.bf16.msra.mxu0 0
        %347 = vmatprep.subr.bf16.mxu0 0
        %348 = vmatpush2.bf16.msra.mxu0 0
        %349 = vmatprep.subr.bf16.mxu0 0
        %350 = vmatpush2.bf16.msra.mxu0 0
        %351 = vmatprep.subr.bf16.mxu0 0
        %352 = vmatpush2.bf16.msra.mxu0 0
        %353 = vmatprep.subr.bf16.mxu0 0
        %354 = vmatpush2.bf16.msra.mxu0 0
        %355 = vmatprep.mubr.bf16.mxu0 0
        %356 = vmatmul.mubr.bf16.gmra.mxu0 %v263
        %v357 = vpop.f32.mrf.mxu0
        %v358 = vadd.f32 %v239, %v357
        %v359 = vpop.f32.mrf.mxu0
        %v360 = vpop.f32.mrf.mxu0
        %v361 = vadd.f32 %v239, %v360
        %v362 = vpop.f32.mrf.mxu0
        %363 = vmatprep.mubr.bf16.mxu0 0
        %364 = vmatmul.mubr.bf16.gmra.mxu0 %v264
        %v365 = vpop.f32.mrf.mxu0
        %v366 = vadd.f32 %v239, %v365
        %v367 = vpop.f32.mrf.mxu0
        %v368 = vpop.f32.mrf.mxu0
        %v369 = vadd.f32 %v239, %v368
        %v370 = vpop.f32.mrf.mxu0
        %371 = vmatprep.mubr.bf16.mxu0 0
        %372 = vmatmul.mubr.bf16.gmra.mxu0 %v265
        %v373 = vpop.f32.mrf.mxu0
        %v374 = vadd.f32 %v239, %v373
        %v375 = vpop.f32.mrf.mxu0
        %v376 = vpop.f32.mrf.mxu0
        %v377 = vadd.f32 %v239, %v376
        %v378 = vpop.f32.mrf.mxu0
        %379 = vmatprep.mubr.bf16.mxu0 0
        %380 = vmatmul.mubr.bf16.gmra.mxu0 %v266
        %v381 = vpop.f32.mrf.mxu0
        %v382 = vadd.f32 %v239, %v381
        %v383 = vpop.f32.mrf.mxu0
        %v384 = vpop.f32.mrf.mxu0
        %v385 = vadd.f32 %v239, %v384
        %v386 = vpop.f32.mrf.mxu0
        %387 = vmatprep.mubr.bf16.mxu0 0
        %388 = vmatmul.mubr.bf16.gmra.mxu0 %v267
        %v389 = vpop.f32.mrf.mxu0
        %v390 = vadd.f32 %v239, %v389
        %v391 = vpop.f32.mrf.mxu0
        %v392 = vpop.f32.mrf.mxu0
        %v393 = vadd.f32 %v239, %v392
        %v394 = vpop.f32.mrf.mxu0
        %395 = vmatprep.mubr.bf16.mxu0 0
        %396 = vmatmul.mubr.bf16.gmra.mxu0 %v268
        %v397 = vpop.f32.mrf.mxu0
        %v398 = vadd.f32 %v239, %v397
        %v399 = vpop.f32.mrf.mxu0
        %v400 = vpop.f32.mrf.mxu0
        %v401 = vpop.f32.mrf.mxu0
        %402 = vdwg.mxu0
        %vm403 = vcmp.ge.f32.partialorder %v358, 0.0
        %vm404 = vcmp.ge.f32.partialorder %v361, 0.0
        %vm405 = vcmp.ge.f32.partialorder %v366, 0.0
        %vm406 = vcmp.ge.f32.partialorder %v369, 0.0
        %vm407 = vcmp.ge.f32.partialorder %v374, 0.0
        %vm408 = vcmp.ge.f32.partialorder %v377, 0.0
        %vm409 = vcmp.ge.f32.partialorder %v382, 0.0
        %vm410 = vcmp.ge.f32.partialorder %v385, 0.0
        %vm411 = vcmp.ge.f32.partialorder %v390, 0.0
        %vm412 = vcmp.ge.f32.partialorder %v393, 0.0
        %vm413 = vcmp.ge.f32.partialorder %v398, 0.0
        %v414 = vmul.f32 %v358, 0.2
        %v415 = vmul.f32 %v361, 0.2
        %v416 = vmul.f32 %v366, 0.2
        %v417 = vmul.f32 %v369, 0.2
        %v418 = vmul.f32 %v374, 0.2
        %v419 = vmul.f32 %v377, 0.2
        %v420 = vmul.f32 %v382, 0.2
        %v421 = vmul.f32 %v385, 0.2
        %v422 = vmul.f32 %v390, 0.2
        %v423 = vmul.f32 %v393, 0.2
        %v424 = vmul.f32 %v398, 0.2
        %v425 = vsel %vm403, %v358, %v414
        %v426 = vsel %vm404, %v361, %v415
        %v427 = vsel %vm405, %v366, %v416
        %v428 = vsel %vm406, %v369, %v417
        %v429 = vsel %vm407, %v374, %v418
        %v430 = vsel %vm408, %v377, %v419
        %v431 = vsel %vm409, %v382, %v420
        %v432 = vsel %vm410, %v385, %v421
        %v433 = vsel %vm411, %v390, %v422
        %v434 = vsel %vm412, %v393, %v423
        %v435 = vsel %vm413, %v398, %v424
        %v436 = vpack.c.bf16 %v426, %v425
        %v437 = vpack.c.bf16 %v428, %v427
        %v438 = vpack.c.bf16 %v430, %v429
        %v439 = vpack.c.bf16 %v432, %v431
        %v440 = vpack.c.bf16 %v434, %v433
        %v441 = vpack.c.bf16 %v435, %v435
        %v448 = vunpack.c.l.b16 %v436
        %v449 = vunpack.c.h.b16 %v436
        %v450 = vunpack.c.l.b16 %v437
        %v451 = vunpack.c.h.b16 %v437
        %v452 = vunpack.c.l.b16 %v438
        %v453 = vunpack.c.h.b16 %v438
        %v454 = vunpack.c.l.b16 %v439
        %v455 = vunpack.c.h.b16 %v439
        %v456 = vunpack.c.l.b16 %v440
        %v457 = vunpack.c.h.b16 %v440
        %v458 = vunpack.c.l.b16 %v441
        %v459 = vpack.c.b16 %v448, %v448
        %v460 = vpack.c.b16 %v449, %v449
        %v461 = vpack.c.b16 %v450, %v450
        %v462 = vpack.c.b16 %v451, %v451
        %v463 = vpack.c.b16 %v452, %v452
        %v464 = vpack.c.b16 %v453, %v453
        %v465 = vpack.c.b16 %v454, %v454
        %v466 = vpack.c.b16 %v455, %v455
        %v467 = vpack.c.b16 %v456, %v456
        %v468 = vpack.c.b16 %v457, %v457
        %v469 = vpack.c.b16 %v458, %v458
        %481 = vst [vmem:[%s203] sm:$0xf] %v459
        %482 = vst [vmem:[%s203 + $0x4] sm:$0xf] %v460
        %483 = vst [vmem:[%s203 + $0x8] sm:$0xf] %v461
        %484 = vst [vmem:[%s203 + $0xc] sm:$0xf] %v462
        %485 = vst [vmem:[%s203 + $0x10] sm:$0xf] %v463
        %486 = vst [vmem:[%s203 + $0x14] sm:$0xf] %v464
        %487 = vst [vmem:[%s203 + $0x18] sm:$0xf] %v465
        %488 = vst [vmem:[%s203 + $0x1c] sm:$0xf] %v466
        %489 = vst [vmem:[%s203 + $0x20] sm:$0xf] %v467
        %490 = vst [vmem:[%s203 + $0x24] sm:$0xf] %v468
        %491 = vst [vmem:[%s203 + $0x28] sm:$0xf] %v469
        %s492 = sand.u32 %s97, 1
        %s493 = scalar_lea.sflag [#allocation4], %s492
        %s494 = sand.u32 %s97, 1
        %s495 = smul.addr %s494, 44
        %s496 = scalar_lea.vmem [#allocation7], %s495
        // Predicated region
        $region41: #{tpu_custom_call.1} parent=31 // pred_check
          %p497 = pneg %p107
        $region42: #{tpu_custom_call.1} parent=31 // pred_check_branch
          %499 = sbr.rel (%p497) target = $region44
        $region43: #{tpu_custom_call.1} parent=31 // pred_region
          %s500 = smul.u32 11, %s21
          %s502 = ssub.s32 704, 704
          %503 = vsyncadd %s493, %s502
          %s504 = smul.addr %s500, 64
          %s505 = scalar_lea.hbm %s3, %s504
          %s506 = sshll.u32 %s496, 4
          %s507 = int_to_ptr.vmem [resolvable:$true] %s506
          %512 = dma.vmem_to_hbm [thread:$0]  %s507, 704, %s505, %s493, 64, 64, 4
        $region44: #{tpu_custom_call.1} parent=31 // pred_fallthru
          _
      $region32: #{tpu_custom_call.1} parent=5 // pred_fallthru
        _
      %p513 = scmp.le.s32.totalorder 2, %s16
      // Predicated region
      $region45: #{tpu_custom_call.1} parent=5 // pred_check
        %p514 = pneg %p513
      $region46: #{tpu_custom_call.1} parent=5 // pred_check_branch
        %516 = sbr.rel (%p514) target = $region48
      $region47: #{tpu_custom_call.1} parent=5 // pred_region
        %s517 = ssub.s32 %s16, 2
        // Predicated region
        $region49: #{tpu_custom_call.1} parent=47 // pred_check
          %p518 = pneg %p113
        $region50: #{tpu_custom_call.1} parent=47 // pred_check_branch
          %520 = sbr.rel (%p518) target = $region52
        $region51: #{tpu_custom_call.1} parent=47 // pred_region
          %s521 = sand.u32 %s98, 1
          %s522 = scalar_lea.sflag [#allocation4], %s521
          %s523 = sand.u32 %s98, 1
          %s524 = smul.addr %s523, 44
          %s525 = scalar_lea.vmem [#allocation7], %s524
          %526 = dma.done %s522, 704
        $region52: #{tpu_custom_call.1} parent=47 // pred_fallthru
          _
      $region48: #{tpu_custom_call.1} parent=5 // pred_fallthru
        _
    $region6: #{tpu_custom_call.1} parent=1 // loop_footer
      %s20 = sadd.s32 1, %s16
    $region7: #{tpu_custom_call.1} parent=1 // loop_footer_branch
      %15 = sbr.rel target = $region3
    $region8: #{tpu_custom_call.1} parent=1 // loop_exit
      _
    %527 = vsyncpa [#allocation3], 1
    %s528 = scalar_lea.sflag [#allocation3], 1
    %529 = vsyncpa %s528, 1
    %530 = vsyncpa [#allocation6], 1
    %531 = vsyncpa [#allocation4], 1
    %s532 = scalar_lea.sflag [#allocation4], 1
    %533 = vsyncpa %s532, 1

</llo_original>
